<compile_context>
chip_gen: v6e
topology: v6e:2x2x1
jax: 0.10.0
libtpu: 0.0.40
codegen_flags: <defaults>
</compile_context>

<pallas_src>
import jax
import jax.numpy as jnp
from jax.experimental import pallas as pl
from jax.experimental.pallas import tpu as pltpu

NEG_SLOPE = 0.01      # nn.LeakyReLU() default negative_slope
IN_FEATURES = 8
HIDDEN = 128
OUT_PAD = 128         # lane-dense padded output width
TILE_B_MAX = 4096     # largest batch tile per grid step (multiple of 16)


def _leaky(x):
    # For x>0: x > slope*x ; for x<0: slope*x > x  -> maximum == LeakyReLU.
    return jnp.maximum(x, NEG_SLOPE * x)


def _round_up(n, m):
    return ((n + m - 1) // m) * m


def dqn_mlp_kernel(x_ref, w1_ref, b1_ref, w2_ref, b2_ref, w3_ref, b3_ref, o_ref):
    # ---- Layer 1: K=8 contraction as 8 VPU broadcast-FMAs, all f32 ----
    # An MXU matmul would pad the 8-deep contraction to a full tile; VALU slots
    # are otherwise idle here, so this keeps the MXU/vex slot free for layers 2-3.
    x = x_ref[...]                                # (tile_b, 8)  f32
    w1 = w1_ref[...]                              # (8, 128)     f32
    h1 = b1_ref[...] + x[:, 0:1] * w1[0:1, :]
    for k in range(1, IN_FEATURES):               # unrolled at trace time
        h1 = h1 + x[:, k:k + 1] * w1[k:k + 1, :]
    h1 = _leaky(h1)

    # ---- Layer 2: bf16 MXU matmul, f32 accumulate, f32 bias + LeakyReLU ----
    h2 = jnp.dot(h1.astype(jnp.bfloat16), w2_ref[...],
                 preferred_element_type=jnp.float32) + b2_ref[...]
    h2 = _leaky(h2)

    # ---- Layer 3: output padded to 128 lanes -> unmasked lane-dense bf16 store ----
    out = jnp.dot(h2.astype(jnp.bfloat16), w3_ref[...],
                  preferred_element_type=jnp.float32) + b3_ref[...]
    o_ref[...] = out.astype(o_ref.dtype)


def prepare_params(params):
    """One-time parameter prep (dtype casts + lane padding of layer 3).

    Weights stored (in_features, out_features). Do this once per parameter set,
    NOT inside the per-call forward, so no pad/cast ops land in the hot loop.
    """
    n_out = params["w3"].shape[1]
    w3_pad = jnp.zeros((HIDDEN, OUT_PAD), jnp.bfloat16).at[:, :n_out].set(
        params["w3"].astype(jnp.bfloat16))
    b3_pad = jnp.zeros((1, OUT_PAD), jnp.float32).at[:, :n_out].set(
        params["b3"].reshape(1, n_out).astype(jnp.float32))
    return {
        "w1": params["w1"].astype(jnp.float32),                      # f32 (VPU layer)
        "b1": params["b1"].reshape(1, HIDDEN).astype(jnp.float32),
        "w2": params["w2"].astype(jnp.bfloat16),                     # bf16 MXU operand
        "b2": params["b2"].reshape(1, HIDDEN).astype(jnp.float32),
        "w3": w3_pad,                                                # bf16, padded
        "b3": b3_pad,                                                # f32, padded
        "n_out": n_out,
    }


def edited_dqn_forward(x, prepped):
    """x: (B, 8) float32. prepped: output of prepare_params(). Returns (B, n_out) f32."""
    n_out = prepped["n_out"]
    B = x.shape[0]

    # Tile sizing: aim for >=2 grid steps (v7x has 2 TCs), cap at TILE_B_MAX,
    # keep a multiple of 16 (bf16 sublane packing of the output block).
    half = _round_up(max(pl.cdiv(B, 2), 1), 16)
    tile_b = min(TILE_B_MAX, half)
    B_pad = _round_up(B, tile_b)

    x_p = x.astype(jnp.float32)
    if B_pad != B:
        x_p = jnp.pad(x_p, ((0, B_pad - B), (0, 0)))

    grid = (B_pad // tile_b,)
    resident = lambda shape: pl.BlockSpec(shape, lambda i: (0, 0))   # stays in VMEM

    flops = 2 * B_pad * (IN_FEATURES * HIDDEN + HIDDEN * HIDDEN + HIDDEN * OUT_PAD)
    bytes_accessed = (
        B_pad * IN_FEATURES * 4                       # x (f32 in)
        + prepped["w1"].size * 4                      # w1 f32
        + (prepped["w2"].size + prepped["w3"].size) * 2   # w2/w3 bf16
        + (prepped["b1"].size + prepped["b2"].size + prepped["b3"].size) * 4
        + B_pad * OUT_PAD * 2                         # bf16 output writeback
    )

    out_padded = pl.pallas_call(
        dqn_mlp_kernel,
        out_shape=jax.ShapeDtypeStruct((B_pad, OUT_PAD), jnp.bfloat16),
        grid=grid,
        in_specs=[
            pl.BlockSpec((tile_b, IN_FEATURES), lambda i: (i, 0)),   # x tiles over batch
            resident((IN_FEATURES, HIDDEN)),                         # w1 (f32)
            resident((1, HIDDEN)),                                   # b1
            resident((HIDDEN, HIDDEN)),                              # w2 (bf16)
            resident((1, HIDDEN)),                                   # b2
            resident((HIDDEN, OUT_PAD)),                             # w3 (bf16, padded)
            resident((1, OUT_PAD)),                                  # b3 (padded)
        ],
        out_specs=pl.BlockSpec((tile_b, OUT_PAD), lambda i: (i, 0)),
        compiler_params=pltpu.CompilerParams(
            dimension_semantics=("parallel",)),
        cost_estimate=pl.CostEstimate(
            flops=flops, transcendentals=0, bytes_accessed=bytes_accessed),
    )(x_p, prepped["w1"], prepped["b1"], prepped["w2"], prepped["b2"],
      prepped["w3"], prepped["b3"])

    return out_padded[:B, :n_out].astype(jnp.float32)


def init_params(key, outputs=4):
    """Deterministic init mirroring nn.Linear default (uniform +/- 1/sqrt(fan_in)).
    Weights stored as (in_features, out_features), all f32."""
    def linear(key, fan_in, fan_out):
        kw, kb = jax.random.split(key)
        bound = 1.0 / (fan_in ** 0.5)
        w = jax.random.uniform(kw, (fan_in, fan_out), jnp.float32, -bound, bound)
        b = jax.random.uniform(kb, (1, fan_out), jnp.float32, -bound, bound)
        return w, b

    k1, k2, k3 = jax.random.split(key, 3)
    w1, b1 = linear(k1, IN_FEATURES, HIDDEN)
    w2, b2 = linear(k2, HIDDEN, HIDDEN)
    w3, b3 = linear(k3, HIDDEN, outputs)
    return {"w1": w1, "b1": b1, "w2": w2, "b2": b2, "w3": w3, "b3": b3}


def reference_forward(x, params):
    """Pure-JAX reference mirroring the kernel's numerics:
    f32 layer 1, bf16 MXU operands with f32 accumulation for layers 2-3."""
    bf = lambda a: a.astype(jnp.bfloat16).astype(jnp.float32)
    h1 = _leaky(x.astype(jnp.float32) @ params["w1"] + params["b1"].reshape(1, -1))
    h2 = _leaky(bf(h1) @ bf(params["w2"]) + params["b2"].reshape(1, -1))
    return bf(h2) @ bf(params["w3"]) + params["b3"].reshape(1, -1)


if __name__ == "__main__":
    key = jax.random.PRNGKey(0)
    k_param, k_x = jax.random.split(key)

    outputs = 4      # LunarLander-v2 action space
    batch = 8
    params = init_params(k_param, outputs=outputs)
    prepped = prepare_params(params)
    x = jax.random.normal(k_x, (batch, IN_FEATURES), jnp.float32)

    y = edited_dqn_forward(x, prepped)
    y = jax.block_until_ready(y)

    y_ref = reference_forward(x, params)
    assert y.shape == (batch, outputs)
    # Kernel output is stored in bf16 (lane-dense writeback), so allow bf16-level tolerance.
    assert jnp.allclose(y, y_ref, atol=2e-2, rtol=2e-2)

    print("KERNEL_OK")
</pallas_src>

<mosaic_0001>
module attributes {stable_mosaic.version = 11 : i64} {
  func.func @dqn_mlp_kernel(%arg0: i32, %arg1: memref<16x8xf32, #tpu.memory_space<vmem>>, %arg2: memref<8x128xf32, #tpu.memory_space<vmem>>, %arg3: memref<1x128xf32, #tpu.memory_space<vmem>>, %arg4: memref<128x128xbf16, #tpu.memory_space<vmem>>, %arg5: memref<1x128xf32, #tpu.memory_space<vmem>>, %arg6: memref<128x128xbf16, #tpu.memory_space<vmem>>, %arg7: memref<1x128xf32, #tpu.memory_space<vmem>>, %arg8: memref<16x128xbf16, #tpu.memory_space<vmem>>) attributes {dimension_semantics = [#tpu.dimension_semantics<parallel>], iteration_bounds = array<i64: 1>, scalar_prefetch = 0 : i64, scratch_operands = 0 : i64, tpu.core_type = #tpu.core_type<tc>, window_params = [{transform_indices = @transform_0, window_bounds = array<i64: 16, 8>}, {pipeline_mode = #tpu.pipeline_mode<synchronous>, transform_indices = @transform_1, window_bounds = array<i64: 8, 128>}, {pipeline_mode = #tpu.pipeline_mode<synchronous>, transform_indices = @transform_2, window_bounds = array<i64: 1, 128>}, {pipeline_mode = #tpu.pipeline_mode<synchronous>, transform_indices = @transform_3, window_bounds = array<i64: 128, 128>}, {pipeline_mode = #tpu.pipeline_mode<synchronous>, transform_indices = @transform_4, window_bounds = array<i64: 1, 128>}, {pipeline_mode = #tpu.pipeline_mode<synchronous>, transform_indices = @transform_5, window_bounds = array<i64: 128, 128>}, {pipeline_mode = #tpu.pipeline_mode<synchronous>, transform_indices = @transform_6, window_bounds = array<i64: 1, 128>}, {transform_indices = @transform_7, window_bounds = array<i64: 16, 128>}]} {
    %c0 = arith.constant 0 : index
    %c0_0 = arith.constant 0 : index
    %0 = vector.load %arg1[%c0, %c0_0] : memref<16x8xf32, #tpu.memory_space<vmem>>, vector<16x8xf32>
    %c0_1 = arith.constant 0 : index
    %c0_2 = arith.constant 0 : index
    %1 = vector.load %arg2[%c0_1, %c0_2] : memref<8x128xf32, #tpu.memory_space<vmem>>, vector<8x128xf32>
    %c0_3 = arith.constant 0 : index
    %c0_4 = arith.constant 0 : index
    %2 = vector.load %arg3[%c0_3, %c0_4] : memref<1x128xf32, #tpu.memory_space<vmem>>, vector<1x128xf32>
    %3 = vector.extract_strided_slice %0 {offsets = [0, 0], sizes = [16, 1], strides = [1, 1]} : vector<16x8xf32> to vector<16x1xf32>
    %4 = vector.extract_strided_slice %1 {offsets = [0, 0], sizes = [1, 128], strides = [1, 1]} : vector<8x128xf32> to vector<1x128xf32>
    %5 = vector.broadcast %3 : vector<16x1xf32> to vector<16x128xf32>
    %6 = vector.broadcast %4 : vector<1x128xf32> to vector<16x128xf32>
    %7 = arith.mulf %5, %6 : vector<16x128xf32>
    %8 = vector.broadcast %2 : vector<1x128xf32> to vector<16x128xf32>
    %9 = arith.addf %8, %7 : vector<16x128xf32>
    %10 = vector.extract_strided_slice %0 {offsets = [0, 1], sizes = [16, 1], strides = [1, 1]} : vector<16x8xf32> to vector<16x1xf32>
    %11 = vector.extract_strided_slice %1 {offsets = [1, 0], sizes = [1, 128], strides = [1, 1]} : vector<8x128xf32> to vector<1x128xf32>
    %12 = vector.broadcast %10 : vector<16x1xf32> to vector<16x128xf32>
    %13 = vector.broadcast %11 : vector<1x128xf32> to vector<16x128xf32>
    %14 = arith.mulf %12, %13 : vector<16x128xf32>
    %15 = arith.addf %9, %14 : vector<16x128xf32>
    %16 = vector.extract_strided_slice %0 {offsets = [0, 2], sizes = [16, 1], strides = [1, 1]} : vector<16x8xf32> to vector<16x1xf32>
    %17 = vector.extract_strided_slice %1 {offsets = [2, 0], sizes = [1, 128], strides = [1, 1]} : vector<8x128xf32> to vector<1x128xf32>
    %18 = vector.broadcast %16 : vector<16x1xf32> to vector<16x128xf32>
    %19 = vector.broadcast %17 : vector<1x128xf32> to vector<16x128xf32>
    %20 = arith.mulf %18, %19 : vector<16x128xf32>
    %21 = arith.addf %15, %20 : vector<16x128xf32>
    %22 = vector.extract_strided_slice %0 {offsets = [0, 3], sizes = [16, 1], strides = [1, 1]} : vector<16x8xf32> to vector<16x1xf32>
    %23 = vector.extract_strided_slice %1 {offsets = [3, 0], sizes = [1, 128], strides = [1, 1]} : vector<8x128xf32> to vector<1x128xf32>
    %24 = vector.broadcast %22 : vector<16x1xf32> to vector<16x128xf32>
    %25 = vector.broadcast %23 : vector<1x128xf32> to vector<16x128xf32>
    %26 = arith.mulf %24, %25 : vector<16x128xf32>
    %27 = arith.addf %21, %26 : vector<16x128xf32>
    %28 = vector.extract_strided_slice %0 {offsets = [0, 4], sizes = [16, 1], strides = [1, 1]} : vector<16x8xf32> to vector<16x1xf32>
    %29 = vector.extract_strided_slice %1 {offsets = [4, 0], sizes = [1, 128], strides = [1, 1]} : vector<8x128xf32> to vector<1x128xf32>
    %30 = vector.broadcast %28 : vector<16x1xf32> to vector<16x128xf32>
    %31 = vector.broadcast %29 : vector<1x128xf32> to vector<16x128xf32>
    %32 = arith.mulf %30, %31 : vector<16x128xf32>
    %33 = arith.addf %27, %32 : vector<16x128xf32>
    %34 = vector.extract_strided_slice %0 {offsets = [0, 5], sizes = [16, 1], strides = [1, 1]} : vector<16x8xf32> to vector<16x1xf32>
    %35 = vector.extract_strided_slice %1 {offsets = [5, 0], sizes = [1, 128], strides = [1, 1]} : vector<8x128xf32> to vector<1x128xf32>
    %36 = vector.broadcast %34 : vector<16x1xf32> to vector<16x128xf32>
    %37 = vector.broadcast %35 : vector<1x128xf32> to vector<16x128xf32>
    %38 = arith.mulf %36, %37 : vector<16x128xf32>
    %39 = arith.addf %33, %38 : vector<16x128xf32>
    %40 = vector.extract_strided_slice %0 {offsets = [0, 6], sizes = [16, 1], strides = [1, 1]} : vector<16x8xf32> to vector<16x1xf32>
    %41 = vector.extract_strided_slice %1 {offsets = [6, 0], sizes = [1, 128], strides = [1, 1]} : vector<8x128xf32> to vector<1x128xf32>
    %42 = vector.broadcast %40 : vector<16x1xf32> to vector<16x128xf32>
    %43 = vector.broadcast %41 : vector<1x128xf32> to vector<16x128xf32>
    %44 = arith.mulf %42, %43 : vector<16x128xf32>
    %45 = arith.addf %39, %44 : vector<16x128xf32>
    %46 = vector.extract_strided_slice %0 {offsets = [0, 7], sizes = [16, 1], strides = [1, 1]} : vector<16x8xf32> to vector<16x1xf32>
    %47 = vector.extract_strided_slice %1 {offsets = [7, 0], sizes = [1, 128], strides = [1, 1]} : vector<8x128xf32> to vector<1x128xf32>
    %48 = vector.broadcast %46 : vector<16x1xf32> to vector<16x128xf32>
    %49 = vector.broadcast %47 : vector<1x128xf32> to vector<16x128xf32>
    %50 = arith.mulf %48, %49 : vector<16x128xf32>
    %51 = arith.addf %45, %50 : vector<16x128xf32>
    %cst = arith.constant 0.00999999977 : f32
    %52 = vector.broadcast %cst : f32 to vector<16x128xf32>
    %53 = arith.mulf %52, %51 : vector<16x128xf32>
    %54 = arith.maximumf %51, %53 : vector<16x128xf32>
    %55 = arith.truncf %54 : vector<16x128xf32> to vector<16x128xbf16>
    %c0_5 = arith.constant 0 : index
    %c0_6 = arith.constant 0 : index
    %56 = vector.load %arg4[%c0_5, %c0_6] : memref<128x128xbf16, #tpu.memory_space<vmem>>, vector<128x128xbf16>
    %cst_7 = arith.constant dense<0.000000e+00> : vector<16x128xf32>
    %57 = tpu.matmul %55, %56, %cst_7 {dimension_numbers = #tpu.dot_dimension_numbers<[1], [0], [0], [1], [0, 0, 1, 1], [], []>} : vector<16x128xbf16>, vector<128x128xbf16>, vector<16x128xf32> -> vector<16x128xf32>
    %c0_8 = arith.constant 0 : index
    %c0_9 = arith.constant 0 : index
    %58 = vector.load %arg5[%c0_8, %c0_9] : memref<1x128xf32, #tpu.memory_space<vmem>>, vector<1x128xf32>
    %59 = vector.broadcast %58 : vector<1x128xf32> to vector<16x128xf32>
    %60 = arith.addf %57, %59 : vector<16x128xf32>
    %cst_10 = arith.constant 0.00999999977 : f32
    %61 = vector.broadcast %cst_10 : f32 to vector<16x128xf32>
    %62 = arith.mulf %61, %60 : vector<16x128xf32>
    %63 = arith.maximumf %60, %62 : vector<16x128xf32>
    %64 = arith.truncf %63 : vector<16x128xf32> to vector<16x128xbf16>
    %c0_11 = arith.constant 0 : index
    %c0_12 = arith.constant 0 : index
    %65 = vector.load %arg6[%c0_11, %c0_12] : memref<128x128xbf16, #tpu.memory_space<vmem>>, vector<128x128xbf16>
    %cst_13 = arith.constant dense<0.000000e+00> : vector<16x128xf32>
    %66 = tpu.matmul %64, %65, %cst_13 {dimension_numbers = #tpu.dot_dimension_numbers<[1], [0], [0], [1], [0, 0, 1, 1], [], []>} : vector<16x128xbf16>, vector<128x128xbf16>, vector<16x128xf32> -> vector<16x128xf32>
    %c0_14 = arith.constant 0 : index
    %c0_15 = arith.constant 0 : index
    %67 = vector.load %arg7[%c0_14, %c0_15] : memref<1x128xf32, #tpu.memory_space<vmem>>, vector<1x128xf32>
    %68 = vector.broadcast %67 : vector<1x128xf32> to vector<16x128xf32>
    %69 = arith.addf %66, %68 : vector<16x128xf32>
    %70 = arith.truncf %69 : vector<16x128xf32> to vector<16x128xbf16>
    %c0_16 = arith.constant 0 : index
    %c0_17 = arith.constant 0 : index
    %71 = vector.load %arg8[%c0_16, %c0_17] : memref<16x128xbf16, #tpu.memory_space<vmem>>, vector<16x128xbf16>
    tpu.vector_store %arg8[%c0_16, %c0_17], %70 {strides = array<i32>} : memref<16x128xbf16, #tpu.memory_space<vmem>>, vector<16x128xbf16>,
    return
  }
  func.func @transform_0(%arg0: i32) -> (i32, i32) {
    %c0_i32 = arith.constant 0 : i32
    %c0_i32_0 = arith.constant 0 : i32
    return %arg0, %c0_i32 : i32, i32
  }
  func.func @transform_1(%arg0: i32) -> (i32, i32) {
    %c0_i32 = arith.constant 0 : i32
    %c0_i32_0 = arith.constant 0 : i32
    %c0_i32_1 = arith.constant 0 : i32
    return %c0_i32, %c0_i32_0 : i32, i32
  }
  func.func @transform_2(%arg0: i32) -> (i32, i32) {
    %c0_i32 = arith.constant 0 : i32
    %c0_i32_0 = arith.constant 0 : i32
    %c0_i32_1 = arith.constant 0 : i32
    return %c0_i32, %c0_i32_0 : i32, i32
  }
  func.func @transform_3(%arg0: i32) -> (i32, i32) {
    %c0_i32 = arith.constant 0 : i32
    %c0_i32_0 = arith.constant 0 : i32
    %c0_i32_1 = arith.constant 0 : i32
    return %c0_i32, %c0_i32_0 : i32, i32
  }
  func.func @transform_4(%arg0: i32) -> (i32, i32) {
    %c0_i32 = arith.constant 0 : i32
    %c0_i32_0 = arith.constant 0 : i32
    %c0_i32_1 = arith.constant 0 : i32
    return %c0_i32, %c0_i32_0 : i32, i32
  }
  func.func @transform_5(%arg0: i32) -> (i32, i32) {
    %c0_i32 = arith.constant 0 : i32
    %c0_i32_0 = arith.constant 0 : i32
    %c0_i32_1 = arith.constant 0 : i32
    return %c0_i32, %c0_i32_0 : i32, i32
  }
  func.func @transform_6(%arg0: i32) -> (i32, i32) {
    %c0_i32 = arith.constant 0 : i32
    %c0_i32_0 = arith.constant 0 : i32
    %c0_i32_1 = arith.constant 0 : i32
    return %c0_i32, %c0_i32_0 : i32, i32
  }
  func.func @transform_7(%arg0: i32) -> (i32, i32) {
    %c0_i32 = arith.constant 0 : i32
    %c0_i32_0 = arith.constant 0 : i32
    return %arg0, %c0_i32 : i32, i32
  }
}

</mosaic_0001>

<llo_original>
// kernel: tpu_custom_call.1
$region0: #{tpu_custom_call.1}
  #allocation0 [shape = 'u32[]', space=smem, size = 0x4, offset = 0x4, fixed_abs, tag = 'smem constant byte address 0x4 - core index']
  #allocation1 [shape = 'u32[144,128]{1,0:T(1,128)}', space=vmem, size = 0x12000, scoped, tag = 'internal scratch']
  %s0 = inlined_call_operand.vmem [shape: f32[16,8], index: 0, kind: input, shape index: {}]
  %s1 = inlined_call_operand.vmem [shape: f32[8,128], index: 1, kind: input, shape index: {}]
  %s2 = inlined_call_operand.vmem [shape: f32[1,128], index: 2, kind: input, shape index: {}]
  %s3 = inlined_call_operand.hbm [shape: bf16[128,128], index: 3, kind: input, shape index: {}]
  %s4 = inlined_call_operand.vmem [shape: f32[1,128], index: 4, kind: input, shape index: {}]
  %s5 = inlined_call_operand.hbm [shape: bf16[128,128], index: 5, kind: input, shape index: {}]
  %s6 = inlined_call_operand.vmem [shape: f32[1,128], index: 6, kind: input, shape index: {}]
  %s7 = inlined_call_operand.hbm [shape: bf16[16,128], index: 7, kind: output, shape index: {}]
  %s8 = sld [smem:[#allocation0]]
  $region46: #{tpu_custom_call.1} parent=0
    _
  %s10 = ssub.s32 1, %s8
  %s11 = scalar_select 0, %s10, %s8
  $region1: #{tpu_custom_call.1} parent=0
    #allocation2 [shape = 'u8[32768]{0}', space=vmem, size = 0x8000, scoped, tag = 'input window, operand 3, single buffered']
    #allocation3 [shape = 's32[1]{0}', space=sflag, size = 0x4, scoped, tag = 'scoped memory for tpu_custom_call.1']
    #allocation4 [shape = 's32[1]{0}', space=sflag, size = 0x4, scoped, tag = 'scoped memory for tpu_custom_call.1']
    #allocation5 [shape = 'u8[32768]{0}', space=vmem, size = 0x8000, scoped, tag = 'input window, operand 5, single buffered']
    #allocation6 [shape = 's32[1]{0}', space=sflag, size = 0x4, scoped, tag = 'scoped memory for tpu_custom_call.1']
    #allocation7 [shape = 'u8[4096]{0}', space=vmem, size = 0x1000, scoped, tag = 'output window, operand 0, single buffered']
    %12 = vsyncpa [#allocation3], 0
    %13 = vsyncpa [#allocation6], 0
    %14 = vsyncpa [#allocation4], 0
    // Predicated region
    $region2: #{tpu_custom_call.1} parent=1 // pred_check
      _
    $region3: #{tpu_custom_call.1} parent=1 // pred_check_branch
      %16 = sbr.rel (0) target = $region5
    $region4: #{tpu_custom_call.1} parent=1 // pred_region
      _
    $region5: #{tpu_custom_call.1} parent=1 // pred_fallthru
      _
    // Predicated region
    $region6: #{tpu_custom_call.1} parent=1 // pred_check
      _
    $region7: #{tpu_custom_call.1} parent=1 // pred_check_branch
      %18 = sbr.rel (0) target = $region9
    $region8: #{tpu_custom_call.1} parent=1 // pred_region
      _
    $region9: #{tpu_custom_call.1} parent=1 // pred_fallthru
      _
    // Predicated region
    $region10: #{tpu_custom_call.1} parent=1 // pred_check
      _
    $region11: #{tpu_custom_call.1} parent=1 // pred_check_branch
      %20 = sbr.rel (0) target = $region13
    $region12: #{tpu_custom_call.1} parent=1 // pred_region
      _
    $region13: #{tpu_custom_call.1} parent=1 // pred_fallthru
      _
    // Predicated region
    $region14: #{tpu_custom_call.1} parent=1 // pred_check
      _
    $region15: #{tpu_custom_call.1} parent=1 // pred_check_branch
      %22 = sbr.rel (0) target = $region17
    $region16: #{tpu_custom_call.1} parent=1 // pred_region
      %s24 = ssub.s32 1024, 1024
      %25 = vsyncadd [#allocation3], %s24
      %s26 = sshll.u32 [#allocation2], 4
      %s27 = int_to_ptr.vmem [resolvable:$true] %s26
      %32 = dma.hbm_to_vmem [thread:$0]  %s3, 1024, %s27, [#allocation3], 64, 64, 4
    $region17: #{tpu_custom_call.1} parent=1 // pred_fallthru
      _
    // Predicated region
    $region18: #{tpu_custom_call.1} parent=1 // pred_check
      _
    $region19: #{tpu_custom_call.1} parent=1 // pred_check_branch
      %34 = sbr.rel (0) target = $region21
    $region20: #{tpu_custom_call.1} parent=1 // pred_region
      _
    $region21: #{tpu_custom_call.1} parent=1 // pred_fallthru
      _
    // Predicated region
    $region22: #{tpu_custom_call.1} parent=1 // pred_check
      _
    $region23: #{tpu_custom_call.1} parent=1 // pred_check_branch
      %36 = sbr.rel (0) target = $region25
    $region24: #{tpu_custom_call.1} parent=1 // pred_region
      %s38 = ssub.s32 1024, 1024
      %39 = vsyncadd [#allocation6], %s38
      %s40 = sshll.u32 [#allocation5], 4
      %s41 = int_to_ptr.vmem [resolvable:$true] %s40
      %46 = dma.hbm_to_vmem [thread:$0]  %s5, 1024, %s41, [#allocation6], 64, 64, 4
    $region25: #{tpu_custom_call.1} parent=1 // pred_fallthru
      _
    // Predicated region
    $region26: #{tpu_custom_call.1} parent=1 // pred_check
      _
    $region27: #{tpu_custom_call.1} parent=1 // pred_check_branch
      %48 = sbr.rel (0) target = $region29
    $region28: #{tpu_custom_call.1} parent=1 // pred_region
      _
    $region29: #{tpu_custom_call.1} parent=1 // pred_fallthru
      _
    // Predicated region
    $region30: #{tpu_custom_call.1} parent=1 // pred_check
      _
    $region31: #{tpu_custom_call.1} parent=1 // pred_check_branch
      %50 = sbr.rel (0) target = $region33
    $region32: #{tpu_custom_call.1} parent=1 // pred_region
      %51 = dma.done [#allocation3], 1024
    $region33: #{tpu_custom_call.1} parent=1 // pred_fallthru
      _
    // Predicated region
    $region34: #{tpu_custom_call.1} parent=1 // pred_check
      _
    $region35: #{tpu_custom_call.1} parent=1 // pred_check_branch
      %53 = sbr.rel (0) target = $region37
    $region36: #{tpu_custom_call.1} parent=1 // pred_region
      %54 = dma.done [#allocation6], 1024
    $region37: #{tpu_custom_call.1} parent=1 // pred_fallthru
      _
    %v56 = vld [vmem:[%s0] sm:$0xff]
    %v57 = vld [vmem:[%s0 + $0x8] sm:$0xff]
    %v58 = vld [vmem:[%s1] sm:$0xff]
    %v59 = vld [vmem:[%s2] sm:$0x1]
    %61 = vset.pattern.permute.xlu0 0
    %62 = vperm.xlu0 %61, %v56
    %v63 = vpop.permute.xlu0 %62
    %66 = vset.pattern.permute.xlu0 0
    %67 = vperm.xlu0 %66, %v57
    %v68 = vpop.permute.xlu0 %67
    %v70 = vlaneseq
    %v71 = vshrl.u32 %v70, 7
    %v72 = vsub.s32 0, %v71
    %v73 = vrot.slane %v58, %v72
    %v74 = vmul.f32 %v63, %v73
    %v75 = vmul.f32 %v68, %v73
    %v77 = vlaneseq
    %v78 = vshrl.u32 %v77, 7
    %v79 = vsub.s32 0, %v78
    %v80 = vrot.slane %v59, %v79
    %v82 = vadd.f32 %v80, %v74
    %v83 = vadd.f32 %v80, %v75
    %84 = vset.pattern.permute.xlu0 1
    %85 = vperm.xlu0 %84, %v56
    %v86 = vpop.permute.xlu0 %85
    %88 = vset.pattern.permute.xlu0 1
    %89 = vperm.xlu0 %88, %v57
    %v90 = vpop.permute.xlu0 %89
    %v92 = vlaneseq
    %v93 = vshrl.u32 %v92, 7
    %v94 = vsub.s32 1, %v93
    %v95 = vrot.slane %v58, %v94
    %v96 = vmul.f32 %v86, %v95
    %v97 = vmul.f32 %v90, %v95
    %v98 = vadd.f32 %v82, %v96
    %v99 = vadd.f32 %v83, %v97
    %100 = vset.pattern.permute.xlu0 2
    %101 = vperm.xlu0 %100, %v56
    %v102 = vpop.permute.xlu0 %101
    %104 = vset.pattern.permute.xlu0 2
    %105 = vperm.xlu0 %104, %v57
    %v106 = vpop.permute.xlu0 %105
    %v108 = vlaneseq
    %v109 = vshrl.u32 %v108, 7
    %v110 = vsub.s32 2, %v109
    %v111 = vrot.slane %v58, %v110
    %v112 = vmul.f32 %v102, %v111
    %v113 = vmul.f32 %v106, %v111
    %v114 = vadd.f32 %v98, %v112
    %v115 = vadd.f32 %v99, %v113
    %116 = vset.pattern.permute.xlu0 3
    %117 = vperm.xlu0 %116, %v56
    %v118 = vpop.permute.xlu0 %117
    %120 = vset.pattern.permute.xlu0 3
    %121 = vperm.xlu0 %120, %v57
    %v122 = vpop.permute.xlu0 %121
    %v124 = vlaneseq
    %v125 = vshrl.u32 %v124, 7
    %v126 = vsub.s32 3, %v125
    %v127 = vrot.slane %v58, %v126
    %v128 = vmul.f32 %v118, %v127
    %v129 = vmul.f32 %v122, %v127
    %v130 = vadd.f32 %v114, %v128
    %v131 = vadd.f32 %v115, %v129
    %132 = vset.pattern.permute.xlu0 4
    %133 = vperm.xlu0 %132, %v56
    %v134 = vpop.permute.xlu0 %133
    %136 = vset.pattern.permute.xlu0 4
    %137 = vperm.xlu0 %136, %v57
    %v138 = vpop.permute.xlu0 %137
    %v140 = vlaneseq
    %v141 = vshrl.u32 %v140, 7
    %v142 = vsub.s32 4, %v141
    %v143 = vrot.slane %v58, %v142
    %v144 = vmul.f32 %v134, %v143
    %v145 = vmul.f32 %v138, %v143
    %v146 = vadd.f32 %v130, %v144
    %v147 = vadd.f32 %v131, %v145
    %148 = vset.pattern.permute.xlu0 5
    %149 = vperm.xlu0 %148, %v56
    %v150 = vpop.permute.xlu0 %149
    %152 = vset.pattern.permute.xlu0 5
    %153 = vperm.xlu0 %152, %v57
    %v154 = vpop.permute.xlu0 %153
    %v156 = vlaneseq
    %v157 = vshrl.u32 %v156, 7
    %v158 = vsub.s32 5, %v157
    %v159 = vrot.slane %v58, %v158
    %v160 = vmul.f32 %v150, %v159
    %v161 = vmul.f32 %v154, %v159
    %v162 = vadd.f32 %v146, %v160
    %v163 = vadd.f32 %v147, %v161
    %164 = vset.pattern.permute.xlu0 6
    %165 = vperm.xlu0 %164, %v56
    %v166 = vpop.permute.xlu0 %165
    %168 = vset.pattern.permute.xlu0 6
    %169 = vperm.xlu0 %168, %v57
    %v170 = vpop.permute.xlu0 %169
    %v172 = vlaneseq
    %v173 = vshrl.u32 %v172, 7
    %v174 = vsub.s32 6, %v173
    %v175 = vrot.slane %v58, %v174
    %v176 = vmul.f32 %v166, %v175
    %v177 = vmul.f32 %v170, %v175
    %v178 = vadd.f32 %v162, %v176
    %v179 = vadd.f32 %v163, %v177
    %180 = vset.pattern.permute.xlu0 7
    %181 = vperm.xlu0 %180, %v56
    %v182 = vpop.permute.xlu0 %181
    %184 = vset.pattern.permute.xlu0 7
    %185 = vperm.xlu0 %184, %v57
    %v186 = vpop.permute.xlu0 %185
    %v188 = vlaneseq
    %v189 = vshrl.u32 %v188, 7
    %v190 = vsub.s32 7, %v189
    %v191 = vrot.slane %v58, %v190
    %v192 = vmul.f32 %v182, %v191
    %v193 = vmul.f32 %v186, %v191
    %v194 = vadd.f32 %v178, %v192
    %v195 = vadd.f32 %v179, %v193
    %v196 = vmul.f32 %v194, 0.01
    %v197 = vmul.f32 %v195, 0.01
    %v198 = vmax.f32 %v194, %v196
    %v199 = vmax.f32 %v195, %v197
    %v200 = vpack.c.bf16 %v199, %v198
    %v201 = vld [vmem:[#allocation2] sm:$0xf]
    %v202 = vld [vmem:[#allocation2 + $0x4] sm:$0xf]
    %v203 = vld [vmem:[#allocation2 + $0x8] sm:$0xf]
    %v204 = vld [vmem:[#allocation2 + $0xc] sm:$0xf]
    %v205 = vld [vmem:[#allocation2 + $0x10] sm:$0xf]
    %v206 = vld [vmem:[#allocation2 + $0x14] sm:$0xf]
    %v207 = vld [vmem:[#allocation2 + $0x18] sm:$0xf]
    %v208 = vld [vmem:[#allocation2 + $0x1c] sm:$0xf]
    %v209 = vld [vmem:[#allocation2 + $0x20] sm:$0xf]
    %v210 = vld [vmem:[#allocation2 + $0x24] sm:$0xf]
    %v211 = vld [vmem:[#allocation2 + $0x28] sm:$0xf]
    %v212 = vld [vmem:[#allocation2 + $0x2c] sm:$0xf]
    %v213 = vld [vmem:[#allocation2 + $0x30] sm:$0xf]
    %v214 = vld [vmem:[#allocation2 + $0x34] sm:$0xf]
    %v215 = vld [vmem:[#allocation2 + $0x38] sm:$0xf]
    %v216 = vld [vmem:[#allocation2 + $0x3c] sm:$0xf]
    %v217 = vld [vmem:[%s4] sm:$0x1]
    %v219 = vlaneseq
    %v220 = vshrl.u32 %v219, 7
    %v221 = vsub.s32 0, %v220
    %v222 = vrot.slane %v217, %v221
    %v240 = vunpack.c.l.b16 %v201
    %v241 = vunpack.c.l.b16 %v202
    %v242 = vunpack.c.l.b16 %v203
    %v243 = vunpack.c.l.b16 %v204
    %v244 = vunpack.c.l.b16 %v205
    %v245 = vunpack.c.l.b16 %v206
    %v246 = vunpack.c.l.b16 %v207
    %v247 = vunpack.c.l.b16 %v208
    %v248 = vunpack.c.l.b16 %v209
    %v249 = vunpack.c.l.b16 %v210
    %v250 = vunpack.c.l.b16 %v211
    %v251 = vunpack.c.l.b16 %v212
    %v252 = vunpack.c.l.b16 %v213
    %v253 = vunpack.c.l.b16 %v214
    %v254 = vunpack.c.l.b16 %v215
    %v255 = vunpack.c.l.b16 %v216
    %v256 = vpack.c.b16 %v241, %v240
    %v257 = vpack.c.b16 %v243, %v242
    %v258 = vpack.c.b16 %v245, %v244
    %v259 = vpack.c.b16 %v247, %v246
    %v260 = vpack.c.b16 %v249, %v248
    %v261 = vpack.c.b16 %v251, %v250
    %v262 = vpack.c.b16 %v253, %v252
    %v263 = vpack.c.b16 %v255, %v254
    %272 = vmatprep.subr.bf16.mxu0 0
    %273 = vmatpush1.bf16.msra.mxu0 %v263
    %274 = vmatprep.subr.bf16.mxu0 0
    %275 = vmatpush1.bf16.msra.mxu0 %v262
    %276 = vmatprep.subr.bf16.mxu0 0
    %277 = vmatpush1.bf16.msra.mxu0 %v261
    %278 = vmatprep.subr.bf16.mxu0 0
    %279 = vmatpush1.bf16.msra.mxu0 %v260
    %280 = vmatprep.subr.bf16.mxu0 0
    %281 = vmatpush1.bf16.msra.mxu0 %v259
    %282 = vmatprep.subr.bf16.mxu0 0
    %283 = vmatpush1.bf16.msra.mxu0 %v258
    %284 = vmatprep.subr.bf16.mxu0 0
    %285 = vmatpush1.bf16.msra.mxu0 %v257
    %286 = vmatprep.subr.bf16.mxu0 0
    %287 = vmatpush1.bf16.msra.mxu0 %v256
    %288 = vmatprep.subr.bf16.mxu0 0
    %289 = vmatpush2.bf16.msra.mxu0 0
    %290 = vmatprep.subr.bf16.mxu0 0
    %291 = vmatpush2.bf16.msra.mxu0 0
    %292 = vmatprep.subr.bf16.mxu0 0
    %293 = vmatpush2.bf16.msra.mxu0 0
    %294 = vmatprep.subr.bf16.mxu0 0
    %295 = vmatpush2.bf16.msra.mxu0 0
    %296 = vmatprep.subr.bf16.mxu0 0
    %297 = vmatpush2.bf16.msra.mxu0 0
    %298 = vmatprep.subr.bf16.mxu0 0
    %299 = vmatpush2.bf16.msra.mxu0 0
    %300 = vmatprep.subr.bf16.mxu0 0
    %301 = vmatpush2.bf16.msra.mxu0 0
    %302 = vmatprep.subr.bf16.mxu0 0
    %303 = vmatpush2.bf16.msra.mxu0 0
    %304 = vmatprep.mubr.bf16.mxu0 0
    %305 = vmatmul.mubr.bf16.gmra.mxu0 %v200
    %v306 = vpop.f32.mrf.mxu0
    %v307 = vadd.f32 %v222, %v306
    %v308 = vpop.f32.mrf.mxu0
    %v309 = vpop.f32.mrf.mxu0
    %v310 = vadd.f32 %v222, %v309
    %v311 = vpop.f32.mrf.mxu0
    %312 = vdwg.mxu0
    %v313 = vmul.f32 %v307, 0.01
    %v314 = vmul.f32 %v310, 0.01
    %v315 = vmax.f32 %v307, %v313
    %v316 = vmax.f32 %v310, %v314
    %v317 = vpack.c.bf16 %v316, %v315
    %v318 = vld [vmem:[#allocation5] sm:$0xf]
    %v319 = vld [vmem:[#allocation5 + $0x4] sm:$0xf]
    %v320 = vld [vmem:[#allocation5 + $0x8] sm:$0xf]
    %v321 = vld [vmem:[#allocation5 + $0xc] sm:$0xf]
    %v322 = vld [vmem:[#allocation5 + $0x10] sm:$0xf]
    %v323 = vld [vmem:[#allocation5 + $0x14] sm:$0xf]
    %v324 = vld [vmem:[#allocation5 + $0x18] sm:$0xf]
    %v325 = vld [vmem:[#allocation5 + $0x1c] sm:$0xf]
    %v326 = vld [vmem:[#allocation5 + $0x20] sm:$0xf]
    %v327 = vld [vmem:[#allocation5 + $0x24] sm:$0xf]
    %v328 = vld [vmem:[#allocation5 + $0x28] sm:$0xf]
    %v329 = vld [vmem:[#allocation5 + $0x2c] sm:$0xf]
    %v330 = vld [vmem:[#allocation5 + $0x30] sm:$0xf]
    %v331 = vld [vmem:[#allocation5 + $0x34] sm:$0xf]
    %v332 = vld [vmem:[#allocation5 + $0x38] sm:$0xf]
    %v333 = vld [vmem:[#allocation5 + $0x3c] sm:$0xf]
    %v334 = vld [vmem:[%s6] sm:$0x1]
    %v336 = vlaneseq
    %v337 = vshrl.u32 %v336, 7
    %v338 = vsub.s32 0, %v337
    %v339 = vrot.slane %v334, %v338
    %v357 = vunpack.c.l.b16 %v318
    %v358 = vunpack.c.l.b16 %v319
    %v359 = vunpack.c.l.b16 %v320
    %v360 = vunpack.c.l.b16 %v321
    %v361 = vunpack.c.l.b16 %v322
    %v362 = vunpack.c.l.b16 %v323
    %v363 = vunpack.c.l.b16 %v324
    %v364 = vunpack.c.l.b16 %v325
    %v365 = vunpack.c.l.b16 %v326
    %v366 = vunpack.c.l.b16 %v327
    %v367 = vunpack.c.l.b16 %v328
    %v368 = vunpack.c.l.b16 %v329
    %v369 = vunpack.c.l.b16 %v330
    %v370 = vunpack.c.l.b16 %v331
    %v371 = vunpack.c.l.b16 %v332
    %v372 = vunpack.c.l.b16 %v333
    %v373 = vpack.c.b16 %v358, %v357
    %v374 = vpack.c.b16 %v360, %v359
    %v375 = vpack.c.b16 %v362, %v361
    %v376 = vpack.c.b16 %v364, %v363
    %v377 = vpack.c.b16 %v366, %v365
    %v378 = vpack.c.b16 %v368, %v367
    %v379 = vpack.c.b16 %v370, %v369
    %v380 = vpack.c.b16 %v372, %v371
    %389 = vmatprep.subr.bf16.mxu0 0
    %390 = vmatpush1.bf16.msra.mxu0 %v380
    %391 = vmatprep.subr.bf16.mxu0 0
    %392 = vmatpush1.bf16.msra.mxu0 %v379
    %393 = vmatprep.subr.bf16.mxu0 0
    %394 = vmatpush1.bf16.msra.mxu0 %v378
    %395 = vmatprep.subr.bf16.mxu0 0
    %396 = vmatpush1.bf16.msra.mxu0 %v377
    %397 = vmatprep.subr.bf16.mxu0 0
    %398 = vmatpush1.bf16.msra.mxu0 %v376
    %399 = vmatprep.subr.bf16.mxu0 0
    %400 = vmatpush1.bf16.msra.mxu0 %v375
    %401 = vmatprep.subr.bf16.mxu0 0
    %402 = vmatpush1.bf16.msra.mxu0 %v374
    %403 = vmatprep.subr.bf16.mxu0 0
    %404 = vmatpush1.bf16.msra.mxu0 %v373
    %405 = vmatprep.subr.bf16.mxu0 0
    %406 = vmatpush2.bf16.msra.mxu0 0
    %407 = vmatprep.subr.bf16.mxu0 0
    %408 = vmatpush2.bf16.msra.mxu0 0
    %409 = vmatprep.subr.bf16.mxu0 0
    %410 = vmatpush2.bf16.msra.mxu0 0
    %411 = vmatprep.subr.bf16.mxu0 0
    %412 = vmatpush2.bf16.msra.mxu0 0
    %413 = vmatprep.subr.bf16.mxu0 0
    %414 = vmatpush2.bf16.msra.mxu0 0
    %415 = vmatprep.subr.bf16.mxu0 0
    %416 = vmatpush2.bf16.msra.mxu0 0
    %417 = vmatprep.subr.bf16.mxu0 0
    %418 = vmatpush2.bf16.msra.mxu0 0
    %419 = vmatprep.subr.bf16.mxu0 0
    %420 = vmatpush2.bf16.msra.mxu0 0
    %421 = vmatprep.mubr.bf16.mxu0 0
    %422 = vmatmul.mubr.bf16.gmra.mxu0 %v317
    %v423 = vpop.f32.mrf.mxu0
    %v424 = vadd.f32 %v339, %v423
    %v425 = vpop.f32.mrf.mxu0
    %v426 = vpop.f32.mrf.mxu0
    %v427 = vadd.f32 %v339, %v426
    %v428 = vpop.f32.mrf.mxu0
    %429 = vdwg.mxu0
    %v430 = vpack.c.bf16 %v427, %v424
    %v432 = vunpack.c.l.b16 %v430
    %v433 = vunpack.c.h.b16 %v430
    %v434 = vpack.c.b16 %v432, %v432
    %v435 = vpack.c.b16 %v433, %v433
    %438 = vst [vmem:[#allocation7] sm:$0xf] %v434
    %439 = vst [vmem:[#allocation7 + $0x4] sm:$0xf] %v435
    // Predicated region
    $region38: #{tpu_custom_call.1} parent=1 // pred_check
      _
    $region39: #{tpu_custom_call.1} parent=1 // pred_check_branch
      %441 = sbr.rel (0) target = $region41
    $region40: #{tpu_custom_call.1} parent=1 // pred_region
      %s443 = ssub.s32 128, 128
      %444 = vsyncadd [#allocation4], %s443
      %s445 = sshll.u32 [#allocation7], 4
      %s446 = int_to_ptr.vmem [resolvable:$true] %s445
      %451 = dma.vmem_to_hbm [thread:$0]  %s446, 128, %s7, [#allocation4], 64, 64, 4
    $region41: #{tpu_custom_call.1} parent=1 // pred_fallthru
      _
    // Predicated region
    $region42: #{tpu_custom_call.1} parent=1 // pred_check
      _
    $region43: #{tpu_custom_call.1} parent=1 // pred_check_branch
      %453 = sbr.rel (0) target = $region45
    $region44: #{tpu_custom_call.1} parent=1 // pred_region
      %454 = dma.done [#allocation4], 128
    $region45: #{tpu_custom_call.1} parent=1 // pred_fallthru
      _
    %455 = vsyncpa [#allocation3], 1
    %456 = vsyncpa [#allocation6], 1
    %457 = vsyncpa [#allocation4], 1

</llo_original>
